<compile_context>
chip_gen: v7x
topology: tpu7x:2x2x1
jax: 0.10.0
libtpu: 0.0.40
codegen_flags: <defaults>
</compile_context>

<pallas_src>
import functools

import numpy as np
import jax
import jax.numpy as jnp
from jax import lax
from jax.experimental import pallas as pl
from jax.experimental.pallas import tpu as pltpu


def _round_up(x, m):
    return (x + m - 1) // m * m


# ----------------------------------------------------------------------------
# Kernel: combined cosine-similarity score (compute_scores hot path).
# One grid step processes BB batch items.  Per item, all 12 reductions are fused
# into a single (8, E) x (E, 9N) NT matmul on the MXU:
#   LHS rows  : [a_hat, b_hat, ones, 0...]          (built once in the wrapper)
#   RHS groups: [iab | amb | bma | iab^2 | amb^2 | bma^2 | amb*iab | bma*iab | amb*bma]
# inv_a / inv_b are hoisted out of the kernel (a_hat/b_hat are pre-normalized),
# so the kernel only needs three EUP rsqrts for the per-window norms.
# ----------------------------------------------------------------------------
def _cosine_score_kernel(lhs_ref, cat_ref, out_ref, *, n):
    lhs = lhs_ref[...]                        # (BB, 8, E)
    cat = cat_ref[...]                        # (BB, 3N, E) = [iab | amb | bma]
    iab = cat[:, 0 * n:1 * n, :]
    amb = cat[:, 1 * n:2 * n, :]
    bma = cat[:, 2 * n:3 * n, :]

    # Fused RHS (BB, 9N, E). Elementwise products kept in f32 (review note: the
    # norm / cross terms lose mantissa if squared in bf16).
    rhs = jnp.concatenate(
        [cat, cat * cat, amb * iab, bma * iab, amb * bma], axis=1)

    # One batched NT matmul -> (BB, 8, 9N); every needed reduction is born
    # lane-dense, nothing goes through the XLU.
    r = lax.dot_general(
        lhs, rhs,
        dimension_numbers=(((2,), (2,)), ((0,), (0,))),
        preferred_element_type=jnp.float32)

    eps2 = jnp.float32(1e-16)                 # eps**2, eps=1e-8 (torch cosine_sim)
    d_a_i = r[:, 0, 0 * n:1 * n]              # a_hat . iab
    d_a_n = r[:, 0, 2 * n:3 * n]              # a_hat . (b-a)
    d_b_i = r[:, 1, 0 * n:1 * n]              # b_hat . iab
    d_b_m = r[:, 1, 1 * n:2 * n]              # b_hat . (a-b)
    ss_i = r[:, 2, 3 * n:4 * n]               # ||iab||^2
    ss_m = r[:, 2, 4 * n:5 * n]               # ||a-b||^2
    ss_n = r[:, 2, 5 * n:6 * n]               # ||b-a||^2
    d_m_i = r[:, 2, 6 * n:7 * n]              # (a-b) . iab
    d_n_i = r[:, 2, 7 * n:8 * n]              # (b-a) . iab
    d_m_n = r[:, 2, 8 * n:9 * n]              # (a-b) . (b-a)

    # rsqrt(max(ss, eps^2)) == 1 / max(||x||, eps)  (EUP; per-vector eps clamp).
    inv_i = lax.rsqrt(jnp.maximum(ss_i, eps2))
    inv_m = lax.rsqrt(jnp.maximum(ss_m, eps2))
    inv_n = lax.rsqrt(jnp.maximum(ss_n, eps2))

    scores = ((d_a_i + d_b_i) * inv_i
              - d_a_n * inv_n - d_b_m * inv_m
              - (d_m_i * inv_m + d_n_i * inv_n) * inv_i
              - d_m_n * (inv_m * inv_n))      # (BB, N)

    n_pad = out_ref.shape[-1]
    if n_pad > n:                             # lane-dense, unmasked (BB, 128k) store
        scores = jnp.concatenate(
            [scores, jnp.zeros((scores.shape[0], n_pad - n), jnp.float32)],
            axis=-1)
    out_ref[...] = scores


@functools.partial(jax.jit, static_argnames=("block_b",))
def cosine_scores_batched(a_emb, b_emb, int_ab, a_minus_b, b_minus_a, *,
                          block_b=8):
    """a_emb, b_emb: (B, E); int_ab / a_minus_b / b_minus_a: (B, N, E).

    Returns (B, N) combined cosine-similarity scores in one pallas_call with
    `block_b` batch items per grid step (grid axis marked "parallel" so v7x's
    two TensorCores can shard the super-blocks).
    """
    B, N, E = int_ab.shape
    eps = jnp.float32(1e-8)

    # Hoisted per-item inverse norms: pre-normalize a/b once in the wrapper
    # (tiny (B,E) work) instead of two (1,1) matmuls + rsqrts per grid step.
    a = a_emb.astype(jnp.float32)
    b = b_emb.astype(jnp.float32)
    a_hat = a / jnp.maximum(jnp.sqrt(jnp.sum(a * a, -1, keepdims=True)), eps)
    b_hat = b / jnp.maximum(jnp.sqrt(jnp.sum(b * b, -1, keepdims=True)), eps)

    # (B, 8, E) LHS stack: rows [a_hat, b_hat, ones, 0...] -- sublane-aligned.
    lhs = jnp.zeros((B, 8, E), jnp.float32)
    lhs = lhs.at[:, 0, :].set(a_hat)
    lhs = lhs.at[:, 1, :].set(b_hat)
    lhs = lhs.at[:, 2, :].set(1.0)

    # One concatenated (B, 3N, E) input stream; groups padded to sublane multiple.
    n8 = _round_up(N, 8)

    def _pad_n(x):
        x = x.astype(jnp.float32)
        return x if n8 == N else jnp.pad(x, ((0, 0), (0, n8 - N), (0, 0)))

    # TODO(synk): on v6e/v7x, cast this stream to bf16 at the HBM boundary for the
    # plain-dot terms (keep squares/cross-products f32) to halve DMA bytes.
    cat3 = jnp.concatenate(
        [_pad_n(int_ab), _pad_n(a_minus_b), _pad_n(b_minus_a)], axis=1)

    bb = min(block_b, B)
    b_pad = _round_up(B, bb)
    if b_pad != B:
        lhs = jnp.pad(lhs, ((0, b_pad - B), (0, 0), (0, 0)))
        cat3 = jnp.pad(cat3, ((0, b_pad - B), (0, 0), (0, 0)))

    n_out = _round_up(n8, 128)                # lane-dense output width
    out = pl.pallas_call(
        functools.partial(_cosine_score_kernel, n=n8),
        out_shape=jax.ShapeDtypeStruct((b_pad, n_out), jnp.float32),
        grid=(b_pad // bb,),
        in_specs=[pl.BlockSpec((bb, 8, E), lambda i: (i, 0, 0)),
                  pl.BlockSpec((bb, 3 * n8, E), lambda i: (i, 0, 0))],
        out_specs=pl.BlockSpec((bb, n_out), lambda i: (i, 0)),
        compiler_params=pltpu.CompilerParams(
            dimension_semantics=("parallel",)),
    )(lhs, cat3)
    # Padded lanes / padded batch rows are sliced off here so they never reach
    # the downstream argsort / bucketing.
    return out[:B, :N]


# ----------------------------------------------------------------------------
# forward() glue: host-side bucketing (data-dependent argsort on tiny arrays)
# + NDCG ratio in plain jnp/XLA (a dedicated pallas_call for a (B,16) reduction
# is pure launch/padding overhead -- dropped per the perf review).
# ----------------------------------------------------------------------------
def make_buckets(scores, num_buckets=10, samples_per_bucket=2):
    tail_buckets = np.repeat(np.arange(num_buckets), samples_per_bucket)
    if len(tail_buckets) > len(scores):
        return tail_buckets[-len(scores):]
    head_buckets = np.zeros(len(scores) - len(tail_buckets))
    return np.concatenate((head_buckets, tail_buckets))


@jax.jit
def _ndcg_jax(gains_pred, gains_ideal):
    L = gains_pred.shape[-1]
    discount = 1.0 / jnp.log2(jnp.arange(L, dtype=jnp.float32) + 2.0)
    dcg = jnp.sum(gains_pred * discount, axis=-1)
    idcg = jnp.sum(gains_ideal * discount, axis=-1)
    return jnp.where(idcg > 0.0, dcg / idcg, 0.0)   # exact divide (no approx)


def reward_forward(all_scores):
    """all_scores: (B, N) per-item score arrays (stand-in for ROUGE-1 scores).

    Returns a (B,) array of NDCG rewards, mirroring RewardModule.forward.
    """
    all_scores = np.asarray(all_scores)
    gains_pred, gains_ideal = [], []
    for scores in all_scores:
        L = len(scores)
        buckets = make_buckets(scores, num_buckets=10, samples_per_bucket=2)
        y_true = np.zeros(L)
        y_true[np.argsort(scores)] = buckets
        y_pred = np.asarray(buckets[::-1], dtype=np.float64)
        # TODO(synk): sklearn.ndcg_score averages DCG over tied y_pred groups;
        # a stable descending argsort is used here instead of tie-averaging.
        order = np.argsort(-y_pred, kind="stable")
        gains_pred.append(y_true[order])
        gains_ideal.append(np.sort(y_true)[::-1])
    gp = jnp.asarray(np.stack(gains_pred), dtype=jnp.float32)
    gi = jnp.asarray(np.stack(gains_ideal), dtype=jnp.float32)
    return _ndcg_jax(gp, gi)


# ----------------------------------------------------------------------------
# Reference (numpy) for the cosine score combination, for a sanity check.
# ----------------------------------------------------------------------------
def _ref_cosine_scores(a, b, iab, amb, bma, eps=1e-8):
    def cos(x, y):
        num = np.sum(x * y, -1)
        den = (np.maximum(np.linalg.norm(x, axis=-1), eps)
               * np.maximum(np.linalg.norm(y, axis=-1), eps))
        return num / den
    a = a[:, None, :]
    b = b[:, None, :]
    return (cos(a, iab) + cos(b, iab) - cos(a, bma) - cos(b, amb)
            - cos(amb, iab) - cos(bma, iab) - cos(amb, bma))


if __name__ == "__main__":
    # Small synthetic shapes: B=2 batch items, N=16 candidate windows,
    # E=128 embedding dim (full lane-width vregs).
    # TODO(synk): ROUGE scoring / SentenceTransformer.encode over strings have no
    # Pallas equivalent; synthetic embeddings stand in for model.encode outputs.
    B, N, E = 2, 16, 128
    key = jax.random.PRNGKey(0)
    ks = jax.random.split(key, 5)
    a_embs = jax.random.normal(ks[0], (B, E), dtype=jnp.float32)
    b_embs = jax.random.normal(ks[1], (B, E), dtype=jnp.float32)
    int_ab = jax.random.normal(ks[2], (B, N, E), dtype=jnp.float32)
    a_minus_b = jax.random.normal(ks[3], (B, N, E), dtype=jnp.float32)
    b_minus_a = jax.random.normal(ks[4], (B, N, E), dtype=jnp.float32)

    # Per-item cosine-combination scores: ONE batched kernel call, ONE host sync.
    scores = cosine_scores_batched(a_embs, b_embs, int_ab, a_minus_b, b_minus_a)
    scores = np.asarray(jax.block_until_ready(scores))          # (B, N)
    assert scores.shape == (B, N)
    assert np.all(np.isfinite(scores))

    ref = _ref_cosine_scores(np.asarray(a_embs), np.asarray(b_embs),
                             np.asarray(int_ab), np.asarray(a_minus_b),
                             np.asarray(b_minus_a))
    # Loose tolerance: MXU f32 matmul may run reduced-precision passes.
    assert np.allclose(scores, ref, atol=1e-1), float(np.abs(scores - ref).max())

    # forward(): bucketize scores on host, NDCG in XLA (exact divide).
    ndcg_scores = reward_forward(scores)
    ndcg_scores = np.asarray(jax.block_until_ready(ndcg_scores))
    assert ndcg_scores.shape == (B,)
    assert np.all(np.isfinite(ndcg_scores))
    assert np.all((ndcg_scores >= 0.0) & (ndcg_scores <= 1.0 + 1e-6))
    print("KERNEL_OK")
</pallas_src>

<mosaic_0001>
module attributes {stable_mosaic.version = 11 : i64} {
  func.func @_cosine_score_kernel(%arg0: i32, %arg1: memref<2x8x128xf32, #tpu.memory_space<vmem>>, %arg2: memref<2x48x128xf32, #tpu.memory_space<vmem>>, %arg3: memref<2x128xf32, #tpu.memory_space<vmem>>) attributes {dimension_semantics = [#tpu.dimension_semantics<parallel>], iteration_bounds = array<i64: 1>, scalar_prefetch = 0 : i64, scratch_operands = 0 : i64, tpu.core_type = #tpu.core_type<tc>, window_params = [{transform_indices = @transform_0, window_bounds = array<i64: 2, 8, 128>}, {transform_indices = @transform_1, window_bounds = array<i64: 2, 48, 128>}, {transform_indices = @transform_2, window_bounds = array<i64: 2, 128>}]} {
    %c0 = arith.constant 0 : index
    %c0_0 = arith.constant 0 : index
    %c0_1 = arith.constant 0 : index
    %0 = vector.load %arg1[%c0, %c0_0, %c0_1] : memref<2x8x128xf32, #tpu.memory_space<vmem>>, vector<2x8x128xf32>
    %c0_2 = arith.constant 0 : index
    %c0_3 = arith.constant 0 : index
    %c0_4 = arith.constant 0 : index
    %1 = vector.load %arg2[%c0_2, %c0_3, %c0_4] : memref<2x48x128xf32, #tpu.memory_space<vmem>>, vector<2x48x128xf32>
    %2 = vector.extract_strided_slice %1 {offsets = [0, 0, 0], sizes = [2, 16, 128], strides = [1, 1, 1]} : vector<2x48x128xf32> to vector<2x16x128xf32>
    %3 = vector.extract_strided_slice %1 {offsets = [0, 16, 0], sizes = [2, 16, 128], strides = [1, 1, 1]} : vector<2x48x128xf32> to vector<2x16x128xf32>
    %4 = vector.extract_strided_slice %1 {offsets = [0, 32, 0], sizes = [2, 16, 128], strides = [1, 1, 1]} : vector<2x48x128xf32> to vector<2x16x128xf32>
    %5 = arith.mulf %1, %1 : vector<2x48x128xf32>
    %6 = arith.mulf %3, %2 : vector<2x16x128xf32>
    %7 = arith.mulf %4, %2 : vector<2x16x128xf32>
    %8 = arith.mulf %3, %4 : vector<2x16x128xf32>
    %9 = tpu.concatenate %1, %5, %6, %7, %8 in 1 : vector<2x48x128xf32>, vector<2x48x128xf32>, vector<2x16x128xf32>, vector<2x16x128xf32>, vector<2x16x128xf32> -> vector<2x144x128xf32>
    %cst = arith.constant dense<0.000000e+00> : vector<2x8x144xf32>
    %10 = tpu.matmul %0, %9, %cst {dimension_numbers = #tpu.dot_dimension_numbers<[2], [2], [1], [1], [0, 0, 0, 1, 1, 1], [0], [0]>} : vector<2x8x128xf32>, vector<2x144x128xf32>, vector<2x8x144xf32> -> vector<2x8x144xf32>
    %11 = vector.extract_strided_slice %10 {offsets = [0, 0, 0], sizes = [2, 1, 16], strides = [1, 1, 1]} : vector<2x8x144xf32> to vector<2x1x16xf32>
    %12 = vector.shape_cast %11 : vector<2x1x16xf32> to vector<2x16xf32>
    %13 = vector.extract_strided_slice %10 {offsets = [0, 0, 32], sizes = [2, 1, 16], strides = [1, 1, 1]} : vector<2x8x144xf32> to vector<2x1x16xf32>
    %14 = vector.shape_cast %13 : vector<2x1x16xf32> to vector<2x16xf32>
    %15 = vector.extract_strided_slice %10 {offsets = [0, 1, 0], sizes = [2, 1, 16], strides = [1, 1, 1]} : vector<2x8x144xf32> to vector<2x1x16xf32>
    %16 = vector.shape_cast %15 : vector<2x1x16xf32> to vector<2x16xf32>
    %17 = vector.extract_strided_slice %10 {offsets = [0, 1, 16], sizes = [2, 1, 16], strides = [1, 1, 1]} : vector<2x8x144xf32> to vector<2x1x16xf32>
    %18 = vector.shape_cast %17 : vector<2x1x16xf32> to vector<2x16xf32>
    %19 = vector.extract_strided_slice %10 {offsets = [0, 2, 48], sizes = [2, 1, 16], strides = [1, 1, 1]} : vector<2x8x144xf32> to vector<2x1x16xf32>
    %20 = vector.shape_cast %19 : vector<2x1x16xf32> to vector<2x16xf32>
    %21 = vector.extract_strided_slice %10 {offsets = [0, 2, 64], sizes = [2, 1, 16], strides = [1, 1, 1]} : vector<2x8x144xf32> to vector<2x1x16xf32>
    %22 = vector.shape_cast %21 : vector<2x1x16xf32> to vector<2x16xf32>
    %23 = vector.extract_strided_slice %10 {offsets = [0, 2, 80], sizes = [2, 1, 16], strides = [1, 1, 1]} : vector<2x8x144xf32> to vector<2x1x16xf32>
    %24 = vector.shape_cast %23 : vector<2x1x16xf32> to vector<2x16xf32>
    %25 = vector.extract_strided_slice %10 {offsets = [0, 2, 96], sizes = [2, 1, 16], strides = [1, 1, 1]} : vector<2x8x144xf32> to vector<2x1x16xf32>
    %26 = vector.shape_cast %25 : vector<2x1x16xf32> to vector<2x16xf32>
    %27 = vector.extract_strided_slice %10 {offsets = [0, 2, 112], sizes = [2, 1, 16], strides = [1, 1, 1]} : vector<2x8x144xf32> to vector<2x1x16xf32>
    %28 = vector.shape_cast %27 : vector<2x1x16xf32> to vector<2x16xf32>
    %29 = vector.extract_strided_slice %10 {offsets = [0, 2, 128], sizes = [2, 1, 16], strides = [1, 1, 1]} : vector<2x8x144xf32> to vector<2x1x16xf32>
    %30 = vector.shape_cast %29 : vector<2x1x16xf32> to vector<2x16xf32>
    %cst_5 = arith.constant 1.000000e-16 : f32
    %31 = vector.broadcast %cst_5 : f32 to vector<2x16xf32>
    %32 = arith.maximumf %20, %31 : vector<2x16xf32>
    %33 = math.rsqrt %32 : vector<2x16xf32>
    %cst_6 = arith.constant 1.000000e-16 : f32
    %34 = vector.broadcast %cst_6 : f32 to vector<2x16xf32>
    %35 = arith.maximumf %22, %34 : vector<2x16xf32>
    %36 = math.rsqrt %35 : vector<2x16xf32>
    %cst_7 = arith.constant 1.000000e-16 : f32
    %37 = vector.broadcast %cst_7 : f32 to vector<2x16xf32>
    %38 = arith.maximumf %24, %37 : vector<2x16xf32>
    %39 = math.rsqrt %38 : vector<2x16xf32>
    %40 = arith.addf %12, %16 : vector<2x16xf32>
    %41 = arith.mulf %40, %33 : vector<2x16xf32>
    %42 = arith.mulf %14, %39 : vector<2x16xf32>
    %43 = arith.subf %41, %42 : vector<2x16xf32>
    %44 = arith.mulf %18, %36 : vector<2x16xf32>
    %45 = arith.subf %43, %44 : vector<2x16xf32>
    %46 = arith.mulf %26, %36 : vector<2x16xf32>
    %47 = arith.mulf %28, %39 : vector<2x16xf32>
    %48 = arith.addf %46, %47 : vector<2x16xf32>
    %49 = arith.mulf %48, %33 : vector<2x16xf32>
    %50 = arith.subf %45, %49 : vector<2x16xf32>
    %51 = arith.mulf %36, %39 : vector<2x16xf32>
    %52 = arith.mulf %30, %51 : vector<2x16xf32>
    %53 = arith.subf %50, %52 : vector<2x16xf32>
    %cst_8 = arith.constant 0.000000e+00 : f32
    %54 = vector.broadcast %cst_8 : f32 to vector<2x112xf32>
    %55 = tpu.concatenate %53, %54 in 1 : vector<2x16xf32>, vector<2x112xf32> -> vector<2x128xf32>
    %c0_9 = arith.constant 0 : index
    %c0_10 = arith.constant 0 : index
    %56 = vector.load %arg3[%c0_9, %c0_10] : memref<2x128xf32, #tpu.memory_space<vmem>>, vector<2x128xf32>
    tpu.vector_store %arg3[%c0_9, %c0_10], %55 {strides = array<i32>} : memref<2x128xf32, #tpu.memory_space<vmem>>, vector<2x128xf32>,
    return
  }
  func.func @transform_0(%arg0: i32) -> (i32, i32, i32) {
    %c0_i32 = arith.constant 0 : i32
    %c0_i32_0 = arith.constant 0 : i32
    %c0_i32_1 = arith.constant 0 : i32
    return %arg0, %c0_i32, %c0_i32_0 : i32, i32, i32
  }
  func.func @transform_1(%arg0: i32) -> (i32, i32, i32) {
    %c0_i32 = arith.constant 0 : i32
    %c0_i32_0 = arith.constant 0 : i32
    %c0_i32_1 = arith.constant 0 : i32
    return %arg0, %c0_i32, %c0_i32_0 : i32, i32, i32
  }
  func.func @transform_2(%arg0: i32) -> (i32, i32) {
    %c0_i32 = arith.constant 0 : i32
    %c0_i32_0 = arith.constant 0 : i32
    return %arg0, %c0_i32 : i32, i32
  }
}

</mosaic_0001>

<llo_original>
// kernel: cosine_scores_batched.1
$region0: #{cosine_scores_batched.1}
  #allocation0 [shape = 'u32[]', space=smem, size = 0x4, offset = 0x4, fixed_abs, tag = 'smem constant byte address 0x4 - core index']
  #allocation1 [shape = 'u32[144,128]{1,0:T(1,128)}', space=vmem, size = 0x12000, scoped, tag = 'internal scratch']
  %s0 = inlined_call_operand.vmem [shape: f32[2,8,128], index: 0, kind: input, shape index: {}]
  %s1 = inlined_call_operand.vmem [shape: f32[2,48,128], index: 1, kind: input, shape index: {}]
  %s2 = inlined_call_operand.hbm [shape: f32[2,128], index: 2, kind: output, shape index: {}]
  %s3 = sld [smem:[#allocation0]]
  $region18: #{cosine_scores_batched.1} parent=0
    _
  %s5 = ssub.s32 1, %s3
  %s6 = scalar_select 0, %s5, %s3
  $region1: #{cosine_scores_batched.1} parent=0
    #allocation2 [shape = 'u8[1024]{0}', space=vmem, size = 0x400, scoped, tag = 'output window, operand 0, single buffered']
    #allocation3 [shape = 's32[1]{0}', space=sflag, size = 0x4, scoped, tag = 'scoped memory for cosine_scores_batched.1']
    %7 = vsyncpa [#allocation3], 0
    // Predicated region
    $region2: #{cosine_scores_batched.1} parent=1 // pred_check
      _
    $region3: #{cosine_scores_batched.1} parent=1 // pred_check_branch
      %9 = sbr.rel (0) target = $region5
    $region4: #{cosine_scores_batched.1} parent=1 // pred_region
      _
    $region5: #{cosine_scores_batched.1} parent=1 // pred_fallthru
      _
    // Predicated region
    $region6: #{cosine_scores_batched.1} parent=1 // pred_check
      _
    $region7: #{cosine_scores_batched.1} parent=1 // pred_check_branch
      %11 = sbr.rel (0) target = $region9
    $region8: #{cosine_scores_batched.1} parent=1 // pred_region
      _
    $region9: #{cosine_scores_batched.1} parent=1 // pred_fallthru
      _
    %v12 = vld [vmem:[%s0] sm:$0xff]
    %v13 = vld [vmem:[%s0 + $0x8] sm:$0xff]
    %v14 = vld [vmem:[%s1] sm:$0xff]
    %v15 = vld [vmem:[%s1 + $0x8] sm:$0xff]
    %v16 = vld [vmem:[%s1 + $0x10] sm:$0xff]
    %v17 = vld [vmem:[%s1 + $0x18] sm:$0xff]
    %v18 = vld [vmem:[%s1 + $0x20] sm:$0xff]
    %v19 = vld [vmem:[%s1 + $0x28] sm:$0xff]
    %v20 = vld [vmem:[%s1 + $0x30] sm:$0xff]
    %v21 = vld [vmem:[%s1 + $0x38] sm:$0xff]
    %v22 = vld [vmem:[%s1 + $0x40] sm:$0xff]
    %v23 = vld [vmem:[%s1 + $0x48] sm:$0xff]
    %v24 = vld [vmem:[%s1 + $0x50] sm:$0xff]
    %v25 = vld [vmem:[%s1 + $0x58] sm:$0xff]
    %v26 = vmul.f32 %v14, %v14
    %v27 = vmul.f32 %v15, %v15
    %v28 = vmul.f32 %v16, %v16
    %v29 = vmul.f32 %v17, %v17
    %v30 = vmul.f32 %v18, %v18
    %v31 = vmul.f32 %v19, %v19
    %v32 = vmul.f32 %v20, %v20
    %v33 = vmul.f32 %v21, %v21
    %v34 = vmul.f32 %v22, %v22
    %v35 = vmul.f32 %v23, %v23
    %v36 = vmul.f32 %v24, %v24
    %v37 = vmul.f32 %v25, %v25
    %v38 = vmul.f32 %v16, %v14
    %v39 = vmul.f32 %v17, %v15
    %v40 = vmul.f32 %v22, %v20
    %v41 = vmul.f32 %v23, %v21
    %v42 = vmul.f32 %v18, %v14
    %v43 = vmul.f32 %v19, %v15
    %v44 = vmul.f32 %v24, %v20
    %v45 = vmul.f32 %v25, %v21
    %v46 = vmul.f32 %v16, %v18
    %v47 = vmul.f32 %v17, %v19
    %v48 = vmul.f32 %v22, %v24
    %v49 = vmul.f32 %v23, %v25
    %50 = vmatprep.subr.mxu0 0.0
    %51 = vmatpush1.xpose.msra.mxu0 %v14
    %52 = vmatprep.subr.mxu0 0.0
    %53 = vmatpush1.xpose.msra.mxu0 %v15
    %54 = vmatprep.subr.mxu0 0.0
    %55 = vmatpush1.xpose.msra.mxu0 %v16
    %56 = vmatprep.subr.mxu0 0.0
    %57 = vmatpush1.xpose.msra.mxu0 %v17
    %58 = vmatprep.subr.mxu0 0.0
    %59 = vmatpush1.xpose.msra.mxu0 %v18
    %60 = vmatprep.subr.mxu0 0.0
    %61 = vmatpush1.xpose.msra.mxu0 %v19
    %62 = vmatprep.subr.mxu0 0.0
    %63 = vmatpush1.xpose.msra.mxu0 %v26
    %64 = vmatprep.subr.mxu0 0.0
    %65 = vmatpush1.xpose.msra.mxu0 %v27
    %66 = vmatprep.subr.mxu0 0.0
    %67 = vmatpush1.xpose.msra.mxu0 %v28
    %68 = vmatprep.subr.mxu0 0.0
    %69 = vmatpush1.xpose.msra.mxu0 %v29
    %70 = vmatprep.subr.mxu0 0.0
    %71 = vmatpush1.xpose.msra.mxu0 %v30
    %72 = vmatprep.subr.mxu0 0.0
    %73 = vmatpush1.xpose.msra.mxu0 %v31
    %74 = vmatprep.subr.mxu0 0.0
    %75 = vmatpush1.xpose.msra.mxu0 %v38
    %76 = vmatprep.subr.mxu0 0.0
    %77 = vmatpush1.xpose.msra.mxu0 %v39
    %78 = vmatprep.subr.mxu0 0.0
    %79 = vmatpush1.xpose.msra.mxu0 %v42
    %80 = vmatprep.subr.mxu0 0.0
    %81 = vmatpush1.xpose.msra.mxu0 %v43
    %82 = vmatprep.subr.mxu0 0.0
    %83 = vmatpush1.xpose.msra.mxu0 %v46
    %84 = vmatprep.subr.mxu0 0.0
    %85 = vmatpush1.xpose.msra.mxu0 %v47
    %86 = vmatprep.subr.mxu0 0.0
    %87 = vmatpush1.xpose.msra.mxu0 0.0
    %88 = vmatprep.subr.mxu0 0.0
    %89 = vmatpush1.xpose.msra.mxu0 0.0
    %90 = vmatprep.subr.mxu0 0.0
    %91 = vmatpush1.xpose.msra.mxu0 0.0
    %92 = vmatprep.subr.mxu0 0.0
    %93 = vmatpush1.xpose.msra.mxu0 0.0
    %94 = vmatprep.subr.mxu0 0.0
    %95 = vmatpush1.xpose.msra.mxu0 0.0
    %96 = vmatprep.subr.mxu0 0.0
    %97 = vmatpush1.xpose.msra.mxu0 0.0
    %98 = vmatprep.subr.mxu0 0.0
    %99 = vmatpush1.xpose.msra.mxu0 0.0
    %100 = vmatprep.subr.mxu0 0.0
    %101 = vmatpush1.xpose.msra.mxu0 0.0
    %102 = vmatprep.subr.mxu0 0.0
    %103 = vmatpush1.xpose.msra.mxu0 0.0
    %104 = vmatprep.subr.mxu0 0.0
    %105 = vmatpush1.xpose.msra.mxu0 0.0
    %106 = vmatprep.subr.mxu0 0.0
    %107 = vmatpush1.xpose.msra.mxu0 0.0
    %108 = vmatprep.subr.mxu0 0.0
    %109 = vmatpush1.xpose.msra.mxu0 0.0
    %110 = vmatprep.subr.mxu0 0.0
    %111 = vmatpush1.xpose.msra.mxu0 0.0
    %112 = vmatprep.subr.mxu0 0.0
    %113 = vmatpush1.xpose.msra.mxu0 0.0
    %114 = vmatprep.mubr.f32.mxu0 0.0
    %115 = vmatmul.mubr.f32.gmra.mrb[0].mxu0 %v12
    %v116 = vpop.f32.mrb[0].mxu0
    %v117 = vadd.f32 0.0, %v116
    %v118 = vpop.f32.mrb[0].mxu0
    %v119 = vadd.f32 0.0, %v118
    %120 = vdwg.mxu0
    %121 = vmatprep.subr.mxu0 0.0
    %122 = vmatpush1.xpose.msra.mxu0 %v20
    %123 = vmatprep.subr.mxu0 0.0
    %124 = vmatpush1.xpose.msra.mxu0 %v21
    %125 = vmatprep.subr.mxu0 0.0
    %126 = vmatpush1.xpose.msra.mxu0 %v22
    %127 = vmatprep.subr.mxu0 0.0
    %128 = vmatpush1.xpose.msra.mxu0 %v23
    %129 = vmatprep.subr.mxu0 0.0
    %130 = vmatpush1.xpose.msra.mxu0 %v24
    %131 = vmatprep.subr.mxu0 0.0
    %132 = vmatpush1.xpose.msra.mxu0 %v25
    %133 = vmatprep.subr.mxu0 0.0
    %134 = vmatpush1.xpose.msra.mxu0 %v32
    %135 = vmatprep.subr.mxu0 0.0
    %136 = vmatpush1.xpose.msra.mxu0 %v33
    %137 = vmatprep.subr.mxu0 0.0
    %138 = vmatpush1.xpose.msra.mxu0 %v34
    %139 = vmatprep.subr.mxu0 0.0
    %140 = vmatpush1.xpose.msra.mxu0 %v35
    %141 = vmatprep.subr.mxu0 0.0
    %142 = vmatpush1.xpose.msra.mxu0 %v36
    %143 = vmatprep.subr.mxu0 0.0
    %144 = vmatpush1.xpose.msra.mxu0 %v37
    %145 = vmatprep.subr.mxu0 0.0
    %146 = vmatpush1.xpose.msra.mxu0 %v40
    %147 = vmatprep.subr.mxu0 0.0
    %148 = vmatpush1.xpose.msra.mxu0 %v41
    %149 = vmatprep.subr.mxu0 0.0
    %150 = vmatpush1.xpose.msra.mxu0 %v44
    %151 = vmatprep.subr.mxu0 0.0
    %152 = vmatpush1.xpose.msra.mxu0 %v45
    %153 = vmatprep.subr.mxu0 0.0
    %154 = vmatpush1.xpose.msra.mxu0 %v48
    %155 = vmatprep.subr.mxu0 0.0
    %156 = vmatpush1.xpose.msra.mxu0 %v49
    %157 = vmatprep.subr.mxu0 0.0
    %158 = vmatpush1.xpose.msra.mxu0 0.0
    %159 = vmatprep.subr.mxu0 0.0
    %160 = vmatpush1.xpose.msra.mxu0 0.0
    %161 = vmatprep.subr.mxu0 0.0
    %162 = vmatpush1.xpose.msra.mxu0 0.0
    %163 = vmatprep.subr.mxu0 0.0
    %164 = vmatpush1.xpose.msra.mxu0 0.0
    %165 = vmatprep.subr.mxu0 0.0
    %166 = vmatpush1.xpose.msra.mxu0 0.0
    %167 = vmatprep.subr.mxu0 0.0
    %168 = vmatpush1.xpose.msra.mxu0 0.0
    %169 = vmatprep.subr.mxu0 0.0
    %170 = vmatpush1.xpose.msra.mxu0 0.0
    %171 = vmatprep.subr.mxu0 0.0
    %172 = vmatpush1.xpose.msra.mxu0 0.0
    %173 = vmatprep.subr.mxu0 0.0
    %174 = vmatpush1.xpose.msra.mxu0 0.0
    %175 = vmatprep.subr.mxu0 0.0
    %176 = vmatpush1.xpose.msra.mxu0 0.0
    %177 = vmatprep.subr.mxu0 0.0
    %178 = vmatpush1.xpose.msra.mxu0 0.0
    %179 = vmatprep.subr.mxu0 0.0
    %180 = vmatpush1.xpose.msra.mxu0 0.0
    %181 = vmatprep.subr.mxu0 0.0
    %182 = vmatpush1.xpose.msra.mxu0 0.0
    %183 = vmatprep.subr.mxu0 0.0
    %184 = vmatpush1.xpose.msra.mxu0 0.0
    %185 = vmatprep.mubr.f32.mxu0 0.0
    %186 = vmatmul.mubr.f32.gmra.mrb[0].mxu0 %v13
    %v187 = vpop.f32.mrb[0].mxu0
    %v188 = vadd.f32 0.0, %v187
    %v189 = vpop.f32.mrb[0].mxu0
    %v190 = vadd.f32 0.0, %v189
    %191 = vdwg.mxu0
    %v192 = vmax.f32 %v117, 1e-16
    %v193 = vmax.f32 %v188, 1e-16
    %v194 = vrsqrt.pop %v192
    %v195 = vrsqrt.pop %v193
    %v198 = vrot.slane %v117, 1
    %v199 = vrot.slane %v188, 1
    %v202 = vadd.f32 %v117, %v198
    %v203 = vadd.f32 %v188, %v199
    %v206 = vrot.slane %v194, 2
    %v207 = vrot.slane %v195, 2
    %208 = vrot.lane.b32.xlu0 %v206, 80
    %v209 = vpop.permute.xlu0 %208
    %210 = vrot.lane.b32.xlu0 %v207, 80
    %v211 = vpop.permute.xlu0 %210
    %v214 = vmul.f32 %v202, %v209
    %v215 = vmul.f32 %v203, %v211
    %v216 = vmul.f32 %v117, %v209
    %v217 = vmul.f32 %v188, %v211
    %220 = vrot.lane.b32.xlu0 %v216, 96
    %v221 = vpop.permute.xlu0 %220
    %222 = vrot.lane.b32.xlu0 %v217, 96
    %v223 = vpop.permute.xlu0 %222
    %v226 = vsub.f32 %v214, %v221
    %v227 = vsub.f32 %v215, %v223
    %v228 = vrot.slane %v194, 1
    %v229 = vrot.slane %v195, 1
    %230 = vrot.lane.b32.xlu0 %v228, 80
    %v231 = vpop.permute.xlu0 %230
    %232 = vrot.lane.b32.xlu0 %v229, 80
    %v233 = vpop.permute.xlu0 %232
    %v236 = vmul.f32 %v117, %v231
    %v237 = vmul.f32 %v188, %v233
    %v240 = vrot.slane %v236, 1
    %v241 = vrot.slane %v237, 1
    %242 = vrot.lane.b32.xlu0 %v240, 112
    %v243 = vpop.permute.xlu0 %242
    %244 = vrot.lane.b32.xlu0 %v241, 112
    %v245 = vpop.permute.xlu0 %244
    %v248 = vsub.f32 %v226, %v243
    %v249 = vsub.f32 %v227, %v245
    %250 = vrot.lane.b32.xlu0 %v194, 32
    %v251 = vpop.permute.xlu0 %250
    %252 = vrot.lane.b32.xlu0 %v195, 32
    %v253 = vpop.permute.xlu0 %252
    %v256 = vmul.f32 %v117, %v251
    %v257 = vmul.f32 %v188, %v253
    %260 = vrot.lane.b32.xlu0 %v256, 112
    %v261 = vpop.permute.xlu0 %260
    %262 = vrot.lane.b32.xlu0 %v257, 112
    %v263 = vpop.permute.xlu0 %262
    %v266 = vadd.f32 %v256, %v261
    %v267 = vadd.f32 %v257, %v263
    %268 = vrot.lane.b32.xlu0 %v194, 48
    %v269 = vpop.permute.xlu0 %268
    %270 = vrot.lane.b32.xlu0 %v195, 48
    %v271 = vpop.permute.xlu0 %270
    %v274 = vmul.f32 %v266, %v269
    %v275 = vmul.f32 %v267, %v271
    %v278 = vrot.slane %v274, 2
    %v279 = vrot.slane %v275, 2
    %280 = vrot.lane.b32.xlu0 %v278, 32
    %v281 = vpop.permute.xlu0 %280
    %282 = vrot.lane.b32.xlu0 %v279, 32
    %v283 = vpop.permute.xlu0 %282
    %v286 = vsub.f32 %v248, %v281
    %v287 = vsub.f32 %v249, %v283
    %288 = vrot.lane.b32.xlu0 %v194, 112
    %v289 = vpop.permute.xlu0 %288
    %290 = vrot.lane.b32.xlu0 %v195, 112
    %v291 = vpop.permute.xlu0 %290
    %v294 = vmul.f32 %v194, %v289
    %v295 = vmul.f32 %v195, %v291
    %298 = vrot.lane.b32.xlu0 %v294, 64
    %v299 = vpop.permute.xlu0 %298
    %300 = vrot.lane.b32.xlu0 %v295, 64
    %v301 = vpop.permute.xlu0 %300
    %v304 = vmul.f32 %v119, %v299
    %v305 = vmul.f32 %v190, %v301
    %v308 = vrot.slane %v304, 2
    %v309 = vrot.slane %v305, 2
    %v312 = vsub.f32 %v286, %v308
    %v313 = vsub.f32 %v287, %v309
    %v316 = vrot.slane %v313, 7
    %vm317 = vcmask 1041409
    %v318 = vsel %vm317, %v316, %v312
    %vm320 = vcmask 130048
    %v321 = vsel %vm320, %v318, 0.0
    %322 = vst [vmem:[#allocation2] sm:$0x3] %v321
    // Predicated region
    $region10: #{cosine_scores_batched.1} parent=1 // pred_check
      _
    $region11: #{cosine_scores_batched.1} parent=1 // pred_check_branch
      %324 = sbr.rel (0) target = $region13
    $region12: #{cosine_scores_batched.1} parent=1 // pred_region
      %s326 = ssub.s32 32, 32
      %327 = vsyncadd [#allocation3], %s326
      %s329 = sshll.u32 [#allocation2], 4
      %s330 = int_to_ptr.vmem [resolvable:$true] %s329
      %332 = dma.vmem_to_hbm [thread:$0]  %s330, 32, %s2, [#allocation3]
    $region13: #{cosine_scores_batched.1} parent=1 // pred_fallthru
      _
    // Predicated region
    $region14: #{cosine_scores_batched.1} parent=1 // pred_check
      _
    $region15: #{cosine_scores_batched.1} parent=1 // pred_check_branch
      %334 = sbr.rel (0) target = $region17
    $region16: #{cosine_scores_batched.1} parent=1 // pred_region
      %335 = dma.done [#allocation3], 32
    $region17: #{cosine_scores_batched.1} parent=1 // pred_fallthru
      _
    %336 = vsyncpa [#allocation3], 1

</llo_original>
